<compile_context>
chip_gen: v5e
topology: v5e:2x2
jax: 0.10.0
libtpu: 0.0.40
codegen_flags: <defaults>
</compile_context>

<pallas_src>
import functools

import jax
import jax.numpy as jnp
from jax.experimental import pallas as pl
from jax.experimental.pallas import tpu as pltpu


def actor_kernel(xT_ref, p_ref, w2T_ref, oT_ref, *, state_dim, action_dim):
    """Fused Actor forward for one batch tile, computed in transposed space.

    xT_ref : (state_dim, TB)               f32   x^T tile (batch on lanes)
    p_ref  : (H, state_dim+action_dim+3)   f32   columns: [W1^T | W3 | b1 | b2 | b3(pad)]
    w2T_ref: (H, H)                        f32/bf16  W2^T (MXU operand)
    oT_ref : (action_dim, TB)              f32   output^T tile (lane-dense store)
    """
    S, A = state_dim, action_dim
    c_b1 = S + A
    c_b2 = c_b1 + 1
    c_b3 = c_b2 + 1

    xT = xT_ref[...]                                       # (S, TB)

    # ---- fc1 + relu on the VPU: K = S is tiny -> broadcast MACs, no MXU ----
    h1 = p_ref[:, c_b1:c_b1 + 1]                           # b1 as (H, 1)
    for s in range(S):                                     # static unroll (S = 3)
        h1 = h1 + p_ref[:, s:s + 1] * xT[s:s + 1, :]       # (H,1)*(1,TB) -> (H,TB)
    h1 = jnp.maximum(h1, 0.0)

    # ---- fc2 + relu: the only real GEMM (H x H x TB) -> MXU, f32 accumulate ----
    h2 = jnp.dot(w2T_ref[...], h1.astype(w2T_ref.dtype),
                 preferred_element_type=jnp.float32)       # (H, TB) f32
    h2 = jnp.maximum(h2 + p_ref[:, c_b2:c_b2 + 1], 0.0)

    # ---- fc3 + tanh*2: N = A tiny -> multiply + sublane reduce (XLU), EUP tanh ----
    rows = []
    for a in range(A):                                     # static unroll (A = 1)
        w3_col = p_ref[:, S + a:S + a + 1]                 # (H, 1)
        b3_a = p_ref[a:a + 1, c_b3:c_b3 + 1]               # (1, 1)
        rows.append(jnp.sum(h2 * w3_col, axis=0, keepdims=True) + b3_a)  # (1, TB)
    h3 = rows[0] if A == 1 else jnp.concatenate(rows, axis=0)
    oT_ref[...] = (jnp.tanh(h3) * 2.0).astype(oT_ref.dtype)


def pack_actor_params(params, *, use_bf16_matmul=False):
    """Pack W1^T, W3, b1, b2, b3 into one small f32 (H, S+A+3) array; W2^T separate."""
    w1, b1 = params["w1"], params["b1"]            # (S, H), (1, H)
    w2, b2 = params["w2"], params["b2"]            # (H, H), (1, H)
    w3, b3 = params["w3"], params["b3"]            # (H, A), (1, A)
    S, H = w1.shape
    A = w3.shape[1]
    assert A <= H, "action_dim must not exceed hidden_dim for bias packing"

    b3_col = jnp.zeros((H, 1), jnp.float32).at[:A, 0].set(
        b3.reshape(A).astype(jnp.float32))
    small = jnp.concatenate(
        [
            w1.T.astype(jnp.float32),                     # cols [0, S)
            w3.astype(jnp.float32),                       # cols [S, S+A)
            b1.reshape(H, 1).astype(jnp.float32),         # col  S+A
            b2.reshape(H, 1).astype(jnp.float32),         # col  S+A+1
            b3_col,                                       # col  S+A+2
        ],
        axis=1,
    )                                                     # (H, S+A+3)
    w2T = w2.T.astype(jnp.bfloat16 if use_bf16_matmul else jnp.float32)
    return small, w2T


def actor_forward(x, params, *, block_batch=512, use_bf16_matmul=False):
    """x: (B, state_dim) f32. Returns (B, action_dim) f32, tanh(.)*2."""
    B, S = x.shape
    H = params["w2"].shape[0]
    A = params["w3"].shape[1]

    small, w2T = pack_actor_params(params, use_bf16_matmul=use_bf16_matmul)

    # Batch maps to the lane axis in-kernel: the tile must be a multiple of 128
    # (or cover the full batch) so blocks stay (8,128)-legal and stores unmasked.
    if B <= block_batch:
        TB = B
    else:
        TB = block_batch
        assert TB % 128 == 0, "block_batch must be a multiple of 128"

    grid = (pl.cdiv(B, TB),)
    xT = x.T  # (S, B): tiny wrapper-side layout plumbing (batch -> lanes)

    kernel = functools.partial(actor_kernel, state_dim=S, action_dim=A)

    outT = pl.pallas_call(
        kernel,
        out_shape=jax.ShapeDtypeStruct((A, B), jnp.float32),
        grid_spec=pltpu.PrefetchScalarGridSpec(
            num_scalar_prefetch=0,
            grid=grid,
            in_specs=[
                pl.BlockSpec((S, TB), lambda i: (0, i)),          # x^T, tiled over batch lanes
                pl.BlockSpec((H, S + A + 3), lambda i: (0, 0)),   # packed params, resident
                pl.BlockSpec((H, H), lambda i: (0, 0)),           # W2^T, resident
            ],
            out_specs=pl.BlockSpec((A, TB), lambda i: (0, i)),    # lane-dense output
        ),
        compiler_params=pltpu.CompilerParams(
            dimension_semantics=("parallel",),   # batch tiles independent -> megacore on v7x
        ),
    )(xT, small, w2T)
    return outT.T  # (B, A)


def init_actor_params(key, state_dim, action_dim, hidden_dim=64):
    """Deterministic init mimicking nn.Linear's U(-1/sqrt(fan_in), 1/sqrt(fan_in))."""
    keys = jax.random.split(key, 6)

    def linear(kw, kb, fan_in, fan_out):
        bound = 1.0 / jnp.sqrt(float(fan_in))
        w = jax.random.uniform(kw, (fan_in, fan_out), jnp.float32, -bound, bound)
        b = jax.random.uniform(kb, (1, fan_out), jnp.float32, -bound, bound)
        return w, b

    w1, b1 = linear(keys[0], keys[1], state_dim, hidden_dim)
    w2, b2 = linear(keys[2], keys[3], hidden_dim, hidden_dim)
    w3, b3 = linear(keys[4], keys[5], hidden_dim, action_dim)
    return dict(w1=w1, b1=b1, w2=w2, b2=b2, w3=w3, b3=b3)


def actor_ref(x, p):
    """Pure-JAX reference for correctness check."""
    h = jnp.maximum(x @ p["w1"] + p["b1"], 0.0)
    h = jnp.maximum(h @ p["w2"] + p["b2"], 0.0)
    return jnp.tanh(h @ p["w3"] + p["b3"]) * 2.0


if __name__ == "__main__":
    # Pendulum-v1 Actor: state_dim=3, action_dim=1, hidden_dim=64 (as in the module).
    batch, state_dim, action_dim, hidden_dim = 16, 3, 1, 64

    key = jax.random.PRNGKey(0)
    k_x, k_p = jax.random.split(key)

    x = jax.random.normal(k_x, (batch, state_dim), dtype=jnp.float32)
    params = init_actor_params(k_p, state_dim, action_dim, hidden_dim)
    ref = actor_ref(x, params)

    # Single-tile f32 path (small inference batch).
    out = jax.block_until_ready(actor_forward(x, params))
    assert out.shape == (batch, action_dim)
    assert jnp.allclose(out, ref, atol=1e-5, rtol=1e-5), "f32 single-tile mismatch"

    # Tiled f32 path: 2 lane-aligned batch tiles (exercises the grid / pipelining).
    xb = jax.random.normal(k_x, (256, state_dim), dtype=jnp.float32)
    refb = actor_ref(xb, params)
    outb = jax.block_until_ready(actor_forward(xb, params, block_batch=128))
    assert outb.shape == (256, action_dim)
    assert jnp.allclose(outb, refb, atol=1e-5, rtol=1e-5), "f32 tiled mismatch"

    # bf16 MXU-operand path (intended for large training batches; looser tolerance).
    outbf = jax.block_until_ready(
        actor_forward(xb, params, block_batch=128, use_bf16_matmul=True))
    assert jnp.allclose(outbf, refb, atol=3e-2, rtol=3e-2), "bf16 path mismatch"

    print("KERNEL_OK")
</pallas_src>

<mosaic_0001>
module attributes {stable_mosaic.version = 11 : i64} {
  func.func @actor_kernel(%arg0: i32, %arg1: memref<3x16xf32, #tpu.memory_space<vmem>>, %arg2: memref<64x7xf32, #tpu.memory_space<vmem>>, %arg3: memref<64x64xf32, #tpu.memory_space<vmem>>, %arg4: memref<1x16xf32, #tpu.memory_space<vmem>>) attributes {dimension_semantics = [#tpu.dimension_semantics<parallel>], iteration_bounds = array<i64: 1>, scalar_prefetch = 0 : i64, scratch_operands = 0 : i64, tpu.core_type = #tpu.core_type<tc>, window_params = [{transform_indices = @transform_0, window_bounds = array<i64: 3, 16>}, {pipeline_mode = #tpu.pipeline_mode<synchronous>, transform_indices = @transform_1, window_bounds = array<i64: 64, 7>}, {pipeline_mode = #tpu.pipeline_mode<synchronous>, transform_indices = @transform_2, window_bounds = array<i64: 64, 64>}, {transform_indices = @transform_3, window_bounds = array<i64: 1, 16>}]} {
    %c0 = arith.constant 0 : index
    %c0_0 = arith.constant 0 : index
    %0 = vector.load %arg1[%c0, %c0_0] : memref<3x16xf32, #tpu.memory_space<vmem>>, vector<3x16xf32>
    %c0_1 = arith.constant 0 : index
    %c4 = arith.constant 4 : index
    %1 = vector.load %arg2[%c0_1, %c4] : memref<64x7xf32, #tpu.memory_space<vmem>>, vector<64x1xf32>
    %c0_2 = arith.constant 0 : index
    %c0_3 = arith.constant 0 : index
    %2 = vector.load %arg2[%c0_2, %c0_3] : memref<64x7xf32, #tpu.memory_space<vmem>>, vector<64x1xf32>
    %3 = vector.extract_strided_slice %0 {offsets = [0, 0], sizes = [1, 16], strides = [1, 1]} : vector<3x16xf32> to vector<1x16xf32>
    %4 = vector.broadcast %2 : vector<64x1xf32> to vector<64x16xf32>
    %5 = vector.broadcast %3 : vector<1x16xf32> to vector<64x16xf32>
    %6 = arith.mulf %4, %5 : vector<64x16xf32>
    %7 = vector.broadcast %1 : vector<64x1xf32> to vector<64x16xf32>
    %8 = arith.addf %7, %6 : vector<64x16xf32>
    %c0_4 = arith.constant 0 : index
    %c1 = arith.constant 1 : index
    %9 = vector.load %arg2[%c0_4, %c1] : memref<64x7xf32, #tpu.memory_space<vmem>>, vector<64x1xf32>
    %10 = vector.extract_strided_slice %0 {offsets = [1, 0], sizes = [1, 16], strides = [1, 1]} : vector<3x16xf32> to vector<1x16xf32>
    %11 = vector.broadcast %9 : vector<64x1xf32> to vector<64x16xf32>
    %12 = vector.broadcast %10 : vector<1x16xf32> to vector<64x16xf32>
    %13 = arith.mulf %11, %12 : vector<64x16xf32>
    %14 = arith.addf %8, %13 : vector<64x16xf32>
    %c0_5 = arith.constant 0 : index
    %c2 = arith.constant 2 : index
    %15 = vector.load %arg2[%c0_5, %c2] : memref<64x7xf32, #tpu.memory_space<vmem>>, vector<64x1xf32>
    %16 = vector.extract_strided_slice %0 {offsets = [2, 0], sizes = [1, 16], strides = [1, 1]} : vector<3x16xf32> to vector<1x16xf32>
    %17 = vector.broadcast %15 : vector<64x1xf32> to vector<64x16xf32>
    %18 = vector.broadcast %16 : vector<1x16xf32> to vector<64x16xf32>
    %19 = arith.mulf %17, %18 : vector<64x16xf32>
    %20 = arith.addf %14, %19 : vector<64x16xf32>
    %cst = arith.constant 0.000000e+00 : f32
    %21 = vector.broadcast %cst : f32 to vector<64x16xf32>
    %22 = arith.maximumf %20, %21 : vector<64x16xf32>
    %c0_6 = arith.constant 0 : index
    %c0_7 = arith.constant 0 : index
    %23 = vector.load %arg3[%c0_6, %c0_7] : memref<64x64xf32, #tpu.memory_space<vmem>>, vector<64x64xf32>
    %cst_8 = arith.constant dense<0.000000e+00> : vector<64x16xf32>
    %24 = tpu.matmul %23, %22, %cst_8 {dimension_numbers = #tpu.dot_dimension_numbers<[1], [0], [0], [1], [0, 0, 1, 1], [], []>} : vector<64x64xf32>, vector<64x16xf32>, vector<64x16xf32> -> vector<64x16xf32>
    %c0_9 = arith.constant 0 : index
    %c5 = arith.constant 5 : index
    %25 = vector.load %arg2[%c0_9, %c5] : memref<64x7xf32, #tpu.memory_space<vmem>>, vector<64x1xf32>
    %26 = vector.broadcast %25 : vector<64x1xf32> to vector<64x16xf32>
    %27 = arith.addf %24, %26 : vector<64x16xf32>
    %cst_10 = arith.constant 0.000000e+00 : f32
    %28 = vector.broadcast %cst_10 : f32 to vector<64x16xf32>
    %29 = arith.maximumf %27, %28 : vector<64x16xf32>
    %c0_11 = arith.constant 0 : index
    %c3 = arith.constant 3 : index
    %30 = vector.load %arg2[%c0_11, %c3] : memref<64x7xf32, #tpu.memory_space<vmem>>, vector<64x1xf32>
    %c0_12 = arith.constant 0 : index
    %c6 = arith.constant 6 : index
    %31 = vector.load %arg2[%c0_12, %c6] : memref<64x7xf32, #tpu.memory_space<vmem>>, vector<1x1xf32>
    %32 = vector.broadcast %30 : vector<64x1xf32> to vector<64x16xf32>
    %33 = arith.mulf %29, %32 : vector<64x16xf32>
    %cst_13 = arith.constant dense<0.000000e+00> : vector<16xf32>
    %34 = vector.multi_reduction <add>, %33, %cst_13 [0] : vector<64x16xf32> to vector<16xf32>
    %35 = vector.shape_cast %34 : vector<16xf32> to vector<1x16xf32>
    %36 = vector.broadcast %31 : vector<1x1xf32> to vector<1x16xf32>
    %37 = arith.addf %35, %36 : vector<1x16xf32>
    %38 = math.tanh %37 : vector<1x16xf32>
    %cst_14 = arith.constant 2.000000e+00 : f32
    %39 = vector.broadcast %cst_14 : f32 to vector<1x16xf32>
    %40 = arith.mulf %38, %39 : vector<1x16xf32>
    %c0_15 = arith.constant 0 : index
    %c0_16 = arith.constant 0 : index
    %41 = vector.load %arg4[%c0_15, %c0_16] : memref<1x16xf32, #tpu.memory_space<vmem>>, vector<1x16xf32>
    tpu.vector_store %arg4[%c0_15, %c0_16], %40 {strides = array<i32>} : memref<1x16xf32, #tpu.memory_space<vmem>>, vector<1x16xf32>,
    return
  }
  func.func @transform_0(%arg0: i32) -> (i32, i32) {
    %c0_i32 = arith.constant 0 : i32
    %c0_i32_0 = arith.constant 0 : i32
    return %c0_i32, %arg0 : i32, i32
  }
  func.func @transform_1(%arg0: i32) -> (i32, i32) {
    %c0_i32 = arith.constant 0 : i32
    %c0_i32_0 = arith.constant 0 : i32
    %c0_i32_1 = arith.constant 0 : i32
    return %c0_i32, %c0_i32_0 : i32, i32
  }
  func.func @transform_2(%arg0: i32) -> (i32, i32) {
    %c0_i32 = arith.constant 0 : i32
    %c0_i32_0 = arith.constant 0 : i32
    %c0_i32_1 = arith.constant 0 : i32
    return %c0_i32, %c0_i32_0 : i32, i32
  }
  func.func @transform_3(%arg0: i32) -> (i32, i32) {
    %c0_i32 = arith.constant 0 : i32
    %c0_i32_0 = arith.constant 0 : i32
    return %c0_i32, %arg0 : i32, i32
  }
}

</mosaic_0001>

<llo_original>
// kernel: tpu_custom_call.1
$region0: #{tpu_custom_call.1}
  #allocation0 [shape = 'u32[]', space=smem, size = 0x4, offset = 0x4, fixed_abs, tag = 'smem constant byte address 0x4 - core index']
  #allocation1 [shape = 'u32[72,128]{1,0:T(1,128)}', space=vmem, size = 0x9000, scoped, tag = 'internal scratch']
  %s0 = inlined_call_operand.vmem [shape: f32[3,16], index: 0, kind: input, shape index: {}]
  %s1 = inlined_call_operand.vmem [shape: f32[64,7], index: 1, kind: input, shape index: {}]
  %s2 = inlined_call_operand.vmem [shape: f32[64,64], index: 2, kind: input, shape index: {}]
  %s3 = inlined_call_operand.hbm [shape: f32[1,16], index: 3, kind: output, shape index: {}]
  %s4 = sld [smem:[#allocation0]]
  $region22: #{tpu_custom_call.1} parent=0
    _
  %s6 = ssub.s32 1, %s4
  %s7 = scalar_select 0, %s6, %s4
  $region1: #{tpu_custom_call.1} parent=0
    #allocation2 [shape = 'u8[512]{0}', space=vmem, size = 0x400, scoped, tag = 'output window, operand 0, single buffered']
    #allocation3 [shape = 's32[1]{0}', space=sflag, size = 0x4, scoped, tag = 'scoped memory for tpu_custom_call.1']
    %8 = vsyncpa [#allocation3], 0
    // Predicated region
    $region2: #{tpu_custom_call.1} parent=1 // pred_check
      _
    $region3: #{tpu_custom_call.1} parent=1 // pred_check_branch
      %10 = sbr.rel (0) target = $region5
    $region4: #{tpu_custom_call.1} parent=1 // pred_region
      _
    $region5: #{tpu_custom_call.1} parent=1 // pred_fallthru
      _
    // Predicated region
    $region6: #{tpu_custom_call.1} parent=1 // pred_check
      _
    $region7: #{tpu_custom_call.1} parent=1 // pred_check_branch
      %12 = sbr.rel (0) target = $region9
    $region8: #{tpu_custom_call.1} parent=1 // pred_region
      _
    $region9: #{tpu_custom_call.1} parent=1 // pred_fallthru
      _
    // Predicated region
    $region10: #{tpu_custom_call.1} parent=1 // pred_check
      _
    $region11: #{tpu_custom_call.1} parent=1 // pred_check_branch
      %14 = sbr.rel (0) target = $region13
    $region12: #{tpu_custom_call.1} parent=1 // pred_region
      _
    $region13: #{tpu_custom_call.1} parent=1 // pred_fallthru
      _
    %v15 = vld [vmem:[%s0] sm:$0x7]
    %v16 = vld [vmem:[%s1] sm:$0xff]
    %v17 = vld [vmem:[%s1 + $0x8] sm:$0xff]
    %v18 = vld [vmem:[%s1 + $0x10] sm:$0xff]
    %v19 = vld [vmem:[%s1 + $0x18] sm:$0xff]
    %v20 = vld [vmem:[%s1 + $0x20] sm:$0xff]
    %v21 = vld [vmem:[%s1 + $0x28] sm:$0xff]
    %v22 = vld [vmem:[%s1 + $0x30] sm:$0xff]
    %v23 = vld [vmem:[%s1 + $0x38] sm:$0xff]
    %25 = vset.pattern.permute.xlu0 0
    %26 = vperm.xlu0 %25, %v16
    %v27 = vpop.permute.xlu0 %26
    %30 = vset.pattern.permute.xlu0 0
    %31 = vperm.xlu0 %30, %v17
    %v32 = vpop.permute.xlu0 %31
    %35 = vset.pattern.permute.xlu0 0
    %36 = vperm.xlu0 %35, %v18
    %v37 = vpop.permute.xlu0 %36
    %40 = vset.pattern.permute.xlu0 0
    %41 = vperm.xlu0 %40, %v19
    %v42 = vpop.permute.xlu0 %41
    %45 = vset.pattern.permute.xlu0 0
    %46 = vperm.xlu0 %45, %v20
    %v47 = vpop.permute.xlu0 %46
    %50 = vset.pattern.permute.xlu0 0
    %51 = vperm.xlu0 %50, %v21
    %v52 = vpop.permute.xlu0 %51
    %55 = vset.pattern.permute.xlu0 0
    %56 = vperm.xlu0 %55, %v22
    %v57 = vpop.permute.xlu0 %56
    %60 = vset.pattern.permute.xlu0 0
    %61 = vperm.xlu0 %60, %v23
    %v62 = vpop.permute.xlu0 %61
    %v64 = vperm.slane %v15, 0
    %v65 = vmul.f32 %v27, %v64
    %v66 = vmul.f32 %v32, %v64
    %v67 = vmul.f32 %v37, %v64
    %v68 = vmul.f32 %v42, %v64
    %v69 = vmul.f32 %v47, %v64
    %v70 = vmul.f32 %v52, %v64
    %v71 = vmul.f32 %v57, %v64
    %v72 = vmul.f32 %v62, %v64
    %73 = vset.pattern.permute.xlu0 4
    %74 = vperm.xlu0 %73, %v16
    %v75 = vpop.permute.xlu0 %74
    %77 = vset.pattern.permute.xlu0 4
    %78 = vperm.xlu0 %77, %v17
    %v79 = vpop.permute.xlu0 %78
    %81 = vset.pattern.permute.xlu0 4
    %82 = vperm.xlu0 %81, %v18
    %v83 = vpop.permute.xlu0 %82
    %85 = vset.pattern.permute.xlu0 4
    %86 = vperm.xlu0 %85, %v19
    %v87 = vpop.permute.xlu0 %86
    %89 = vset.pattern.permute.xlu0 4
    %90 = vperm.xlu0 %89, %v20
    %v91 = vpop.permute.xlu0 %90
    %93 = vset.pattern.permute.xlu0 4
    %94 = vperm.xlu0 %93, %v21
    %v95 = vpop.permute.xlu0 %94
    %97 = vset.pattern.permute.xlu0 4
    %98 = vperm.xlu0 %97, %v22
    %v99 = vpop.permute.xlu0 %98
    %101 = vset.pattern.permute.xlu0 4
    %102 = vperm.xlu0 %101, %v23
    %v103 = vpop.permute.xlu0 %102
    %v105 = vadd.f32 %v75, %v65
    %v106 = vadd.f32 %v79, %v66
    %v107 = vadd.f32 %v83, %v67
    %v108 = vadd.f32 %v87, %v68
    %v109 = vadd.f32 %v91, %v69
    %v110 = vadd.f32 %v95, %v70
    %v111 = vadd.f32 %v99, %v71
    %v112 = vadd.f32 %v103, %v72
    %113 = vset.pattern.permute.xlu0 1
    %114 = vperm.xlu0 %113, %v16
    %v115 = vpop.permute.xlu0 %114
    %117 = vset.pattern.permute.xlu0 1
    %118 = vperm.xlu0 %117, %v17
    %v119 = vpop.permute.xlu0 %118
    %121 = vset.pattern.permute.xlu0 1
    %122 = vperm.xlu0 %121, %v18
    %v123 = vpop.permute.xlu0 %122
    %125 = vset.pattern.permute.xlu0 1
    %126 = vperm.xlu0 %125, %v19
    %v127 = vpop.permute.xlu0 %126
    %129 = vset.pattern.permute.xlu0 1
    %130 = vperm.xlu0 %129, %v20
    %v131 = vpop.permute.xlu0 %130
    %133 = vset.pattern.permute.xlu0 1
    %134 = vperm.xlu0 %133, %v21
    %v135 = vpop.permute.xlu0 %134
    %137 = vset.pattern.permute.xlu0 1
    %138 = vperm.xlu0 %137, %v22
    %v139 = vpop.permute.xlu0 %138
    %141 = vset.pattern.permute.xlu0 1
    %142 = vperm.xlu0 %141, %v23
    %v143 = vpop.permute.xlu0 %142
    %v145 = vperm.slane %v15, 1
    %v146 = vmul.f32 %v115, %v145
    %v147 = vmul.f32 %v119, %v145
    %v148 = vmul.f32 %v123, %v145
    %v149 = vmul.f32 %v127, %v145
    %v150 = vmul.f32 %v131, %v145
    %v151 = vmul.f32 %v135, %v145
    %v152 = vmul.f32 %v139, %v145
    %v153 = vmul.f32 %v143, %v145
    %v154 = vadd.f32 %v105, %v146
    %v155 = vadd.f32 %v106, %v147
    %v156 = vadd.f32 %v107, %v148
    %v157 = vadd.f32 %v108, %v149
    %v158 = vadd.f32 %v109, %v150
    %v159 = vadd.f32 %v110, %v151
    %v160 = vadd.f32 %v111, %v152
    %v161 = vadd.f32 %v112, %v153
    %162 = vset.pattern.permute.xlu0 2
    %163 = vperm.xlu0 %162, %v16
    %v164 = vpop.permute.xlu0 %163
    %166 = vset.pattern.permute.xlu0 2
    %167 = vperm.xlu0 %166, %v17
    %v168 = vpop.permute.xlu0 %167
    %170 = vset.pattern.permute.xlu0 2
    %171 = vperm.xlu0 %170, %v18
    %v172 = vpop.permute.xlu0 %171
    %174 = vset.pattern.permute.xlu0 2
    %175 = vperm.xlu0 %174, %v19
    %v176 = vpop.permute.xlu0 %175
    %178 = vset.pattern.permute.xlu0 2
    %179 = vperm.xlu0 %178, %v20
    %v180 = vpop.permute.xlu0 %179
    %182 = vset.pattern.permute.xlu0 2
    %183 = vperm.xlu0 %182, %v21
    %v184 = vpop.permute.xlu0 %183
    %186 = vset.pattern.permute.xlu0 2
    %187 = vperm.xlu0 %186, %v22
    %v188 = vpop.permute.xlu0 %187
    %190 = vset.pattern.permute.xlu0 2
    %191 = vperm.xlu0 %190, %v23
    %v192 = vpop.permute.xlu0 %191
    %v194 = vperm.slane %v15, 2
    %v195 = vmul.f32 %v164, %v194
    %v196 = vmul.f32 %v168, %v194
    %v197 = vmul.f32 %v172, %v194
    %v198 = vmul.f32 %v176, %v194
    %v199 = vmul.f32 %v180, %v194
    %v200 = vmul.f32 %v184, %v194
    %v201 = vmul.f32 %v188, %v194
    %v202 = vmul.f32 %v192, %v194
    %v203 = vadd.f32 %v154, %v195
    %v204 = vadd.f32 %v155, %v196
    %v205 = vadd.f32 %v156, %v197
    %v206 = vadd.f32 %v157, %v198
    %v207 = vadd.f32 %v158, %v199
    %v208 = vadd.f32 %v159, %v200
    %v209 = vadd.f32 %v160, %v201
    %v210 = vadd.f32 %v161, %v202
    %v211 = vmax.f32 %v203, 0.0
    %v212 = vmax.f32 %v204, 0.0
    %v213 = vmax.f32 %v205, 0.0
    %v214 = vmax.f32 %v206, 0.0
    %v215 = vmax.f32 %v207, 0.0
    %v216 = vmax.f32 %v208, 0.0
    %v217 = vmax.f32 %v209, 0.0
    %v218 = vmax.f32 %v210, 0.0
    %v219 = vld [vmem:[%s2] sm:$0xff]
    %v220 = vld [vmem:[%s2 + $0x8] sm:$0xff]
    %v221 = vld [vmem:[%s2 + $0x10] sm:$0xff]
    %v222 = vld [vmem:[%s2 + $0x18] sm:$0xff]
    %v223 = vld [vmem:[%s2 + $0x20] sm:$0xff]
    %v224 = vld [vmem:[%s2 + $0x28] sm:$0xff]
    %v225 = vld [vmem:[%s2 + $0x30] sm:$0xff]
    %v226 = vld [vmem:[%s2 + $0x38] sm:$0xff]
    %227 = vset.pattern.permute.xlu0 5
    %228 = vperm.xlu0 %227, %v16
    %v229 = vpop.permute.xlu0 %228
    %231 = vset.pattern.permute.xlu0 5
    %232 = vperm.xlu0 %231, %v17
    %v233 = vpop.permute.xlu0 %232
    %235 = vset.pattern.permute.xlu0 5
    %236 = vperm.xlu0 %235, %v18
    %v237 = vpop.permute.xlu0 %236
    %239 = vset.pattern.permute.xlu0 5
    %240 = vperm.xlu0 %239, %v19
    %v241 = vpop.permute.xlu0 %240
    %243 = vset.pattern.permute.xlu0 5
    %244 = vperm.xlu0 %243, %v20
    %v245 = vpop.permute.xlu0 %244
    %247 = vset.pattern.permute.xlu0 5
    %248 = vperm.xlu0 %247, %v21
    %v249 = vpop.permute.xlu0 %248
    %251 = vset.pattern.permute.xlu0 5
    %252 = vperm.xlu0 %251, %v22
    %v253 = vpop.permute.xlu0 %252
    %255 = vset.pattern.permute.xlu0 5
    %256 = vperm.xlu0 %255, %v23
    %v257 = vpop.permute.xlu0 %256
    %vm259 = vcmask 523264
    %v261 = vsel %vm259, %v219, 0
    %v264 = vsel %vm259, %v220, 0
    %v267 = vsel %vm259, %v221, 0
    %v270 = vsel %vm259, %v222, 0
    %v273 = vsel %vm259, %v223, 0
    %v276 = vsel %vm259, %v224, 0
    %v279 = vsel %vm259, %v225, 0
    %v282 = vsel %vm259, %v226, 0
    %284 = vmatpush.msra.mxu0 0.0
    %285 = vmatpush.msra.mxu0 0.0
    %286 = vmatpush.msra.mxu0 0.0
    %287 = vmatpush.msra.mxu0 0.0
    %288 = vmatpush.msra.mxu0 0.0
    %289 = vmatpush.msra.mxu0 0.0
    %290 = vmatpush.msra.mxu0 0.0
    %291 = vmatpush.msra.mxu0 0.0
    %292 = vmatpush.msra.mxu0 %v218
    %293 = vmatpush.msra.mxu0 %v217
    %294 = vmatpush.msra.mxu0 %v216
    %295 = vmatpush.msra.mxu0 %v215
    %296 = vmatpush.msra.mxu0 %v214
    %297 = vmatpush.msra.mxu0 %v213
    %298 = vmatpush.msra.mxu0 %v212
    %299 = vmatpush.msra.mxu0 %v211
    %300 = vmatmul.f32.gmra.mxu0 %v261
    %v301 = vpop.f32.mrf.mxu0
    %v302 = vadd.f32 %v229, %v301
    %303 = vmatmul.f32.gmra.mxu0 %v264
    %v304 = vpop.f32.mrf.mxu0
    %v305 = vadd.f32 %v233, %v304
    %306 = vmatmul.f32.gmra.mxu0 %v267
    %v307 = vpop.f32.mrf.mxu0
    %v308 = vadd.f32 %v237, %v307
    %309 = vmatmul.f32.gmra.mxu0 %v270
    %v310 = vpop.f32.mrf.mxu0
    %v311 = vadd.f32 %v241, %v310
    %312 = vmatmul.f32.gmra.mxu0 %v273
    %v313 = vpop.f32.mrf.mxu0
    %v314 = vadd.f32 %v245, %v313
    %315 = vmatmul.f32.gmra.mxu0 %v276
    %v316 = vpop.f32.mrf.mxu0
    %v317 = vadd.f32 %v249, %v316
    %318 = vmatmul.f32.gmra.mxu0 %v279
    %v319 = vpop.f32.mrf.mxu0
    %v320 = vadd.f32 %v253, %v319
    %321 = vmatmul.f32.gmra.mxu0 %v282
    %v322 = vpop.f32.mrf.mxu0
    %v323 = vadd.f32 %v257, %v322
    %324 = vdwg.mxu0
    %v325 = vmax.f32 %v302, 0.0
    %v326 = vmax.f32 %v305, 0.0
    %v327 = vmax.f32 %v308, 0.0
    %v328 = vmax.f32 %v311, 0.0
    %v329 = vmax.f32 %v314, 0.0
    %v330 = vmax.f32 %v317, 0.0
    %v331 = vmax.f32 %v320, 0.0
    %v332 = vmax.f32 %v323, 0.0
    %v333 = vld [vmem:[%s1] sm:$0x1]
    %334 = vset.pattern.permute.xlu0 3
    %335 = vperm.xlu0 %334, %v16
    %v336 = vpop.permute.xlu0 %335
    %338 = vset.pattern.permute.xlu0 3
    %339 = vperm.xlu0 %338, %v17
    %v340 = vpop.permute.xlu0 %339
    %342 = vset.pattern.permute.xlu0 3
    %343 = vperm.xlu0 %342, %v18
    %v344 = vpop.permute.xlu0 %343
    %346 = vset.pattern.permute.xlu0 3
    %347 = vperm.xlu0 %346, %v19
    %v348 = vpop.permute.xlu0 %347
    %350 = vset.pattern.permute.xlu0 3
    %351 = vperm.xlu0 %350, %v20
    %v352 = vpop.permute.xlu0 %351
    %354 = vset.pattern.permute.xlu0 3
    %355 = vperm.xlu0 %354, %v21
    %v356 = vpop.permute.xlu0 %355
    %358 = vset.pattern.permute.xlu0 3
    %359 = vperm.xlu0 %358, %v22
    %v360 = vpop.permute.xlu0 %359
    %362 = vset.pattern.permute.xlu0 3
    %363 = vperm.xlu0 %362, %v23
    %v364 = vpop.permute.xlu0 %363
    %v366 = vmul.f32 %v325, %v336
    %v367 = vmul.f32 %v326, %v340
    %v368 = vmul.f32 %v327, %v344
    %v369 = vmul.f32 %v328, %v348
    %v370 = vmul.f32 %v329, %v352
    %v371 = vmul.f32 %v330, %v356
    %v372 = vmul.f32 %v331, %v360
    %v373 = vmul.f32 %v332, %v364
    %vm374 = vcmask 130048
    %v375 = vsel %vm374, %v366, 0.0
    %v376 = vsel %vm374, %v367, 0.0
    %v377 = vadd.f32 %v375, %v376
    %v378 = vsel %vm374, %v368, 0.0
    %v379 = vadd.f32 %v377, %v378
    %v380 = vsel %vm374, %v369, 0.0
    %v381 = vadd.f32 %v379, %v380
    %v382 = vsel %vm374, %v370, 0.0
    %v383 = vadd.f32 %v381, %v382
    %v384 = vsel %vm374, %v371, 0.0
    %v385 = vadd.f32 %v383, %v384
    %v386 = vsel %vm374, %v372, 0.0
    %v387 = vadd.f32 %v385, %v386
    %v388 = vsel %vm374, %v373, 0.0
    %v389 = vadd.f32 %v387, %v388
    %v390 = vrot.slane %v389, 4
    %v391 = vadd.f32 %v389, %v390
    %v392 = vrot.slane %v391, 2
    %v393 = vadd.f32 %v391, %v392
    %v394 = vrot.slane %v393, 1
    %v395 = vadd.f32 %v393, %v394
    %397 = vset.pattern.permute.xlu0 6
    %398 = vperm.xlu0 %397, %v333
    %v399 = vpop.permute.xlu0 %398
    %v401 = vadd.f32 %v395, %v399
    %v402 = vtanh.pop %v401
    %v403 = vmul.f32 %v402, 2.0
    %vm404 = vcmask 122880
    %405 = vst.msk [vmem:[#allocation2] sm:$0x1] %vm404, %v403
    // Predicated region
    $region14: #{tpu_custom_call.1} parent=1 // pred_check
      _
    $region15: #{tpu_custom_call.1} parent=1 // pred_check_branch
      %407 = sbr.rel (0) target = $region17
    $region16: #{tpu_custom_call.1} parent=1 // pred_region
      %409 = vsyncadd [#allocation3], 0
      %s411 = sshll.u32 [#allocation2], 4
      %s412 = int_to_ptr.vmem [resolvable:$true] %s411
      %s413 = sshll.u32 %s3, 4
      %s414 = int_to_ptr.hbm [resolvable:$true] %s413
      %416 = dma.vmem_to_hbm [thread:$0]  %s412, 16, %s414, [#allocation3]
    $region17: #{tpu_custom_call.1} parent=1 // pred_fallthru
      _
    // Predicated region
    $region18: #{tpu_custom_call.1} parent=1 // pred_check
      _
    $region19: #{tpu_custom_call.1} parent=1 // pred_check_branch
      %418 = sbr.rel (0) target = $region21
    $region20: #{tpu_custom_call.1} parent=1 // pred_region
      %420 = dma.done [#allocation3], 16
    $region21: #{tpu_custom_call.1} parent=1 // pred_fallthru
      _
    %421 = vsyncpa [#allocation3], 1

</llo_original>
